<compile_context>
chip_gen: v7x
topology: tpu7x:2x2x1
jax: 0.10.0
libtpu: 0.0.40
codegen_flags: <defaults>
</compile_context>

<pallas_src>
import jax
import jax.numpy as jnp
from jax import lax
from jax.experimental import pallas as pl
from jax.experimental.pallas import tpu as pltpu

EPS = 1e-5  # PyTorch InstanceNorm2d default eps


def _round_up(x, m):
    return (x + m - 1) // m * m


def _make_kernel(H, W, C, CP, lead):
    """Build the per-image kernel (H, W, C, CP, lead are static Python ints)."""
    HW = H * W
    taps = [(dy, dx) for dy in (-1, 0, 1) for dx in (-1, 0, 1)]  # (ky-1, kx-1)

    def kernel(x_ref, w_ref, gamma_ref, beta_ref, out_ref, pad_ref, col_ref):
        # x_ref     : (1, C, HW)   f32   flattened NCHW image (lane-dense)
        # w_ref     : (C, 9*CP)    bf16  conv weight, tap-major, Cin padded to CP
        # gamma_ref : (C, 1)       f32   InstanceNorm scale
        # beta_ref  : (C, 1)       f32   InstanceNorm shift
        # out_ref   : (1, C, HW)
        # pad_ref   : (C, lead+HW+W+1) f32  flat image with zero guard bands
        # col_ref   : (9*CP, HW)   f32   im2col matrix
        #
        # Re-zero guard bands / pad rows every step (a few vst's only) so no
        # cross-step scratch state is required.
        pad_ref[...] = jnp.zeros_like(pad_ref)
        col_ref[...] = jnp.zeros_like(col_ref)

        x = x_ref[0].astype(jnp.float32)              # (C, HW), lane-dense
        pad_ref[:, lead:lead + HW] = x                # 128-aligned interior store

        # Column-validity masks for the horizontally shifted taps
        # (row shifts are handled exactly by the zero guard bands).
        lane = lax.broadcasted_iota(jnp.int32, (1, HW), 1)
        if W & (W - 1) == 0:
            wpos = lane & (W - 1)
        else:
            wpos = lane % W
        ok_left = wpos >= 1          # tap reads column w-1
        ok_right = wpos <= W - 2     # tap reads column w+1

        # Build the im2col matrix: row block t holds the image shifted by (dy,dx).
        for t, (dy, dx) in enumerate(taps):
            start = lead + dy * W + dx
            tap = pad_ref[:, start:start + HW]        # (C, HW)
            if dx == -1:
                tap = jnp.where(ok_left, tap, 0.0)
            elif dx == 1:
                tap = jnp.where(ok_right, tap, 0.0)
            col_ref[t * CP:t * CP + C, :] = tap       # sublane-tile aligned store

        # Single fused contraction over K = 9*CP (bf16 operands, f32 accumulate).
        acc = jnp.dot(w_ref[...], col_ref[...].astype(jnp.bfloat16),
                      preferred_element_type=jnp.float32)          # (C, HW)

        # InstanceNorm2d: per-instance, per-channel stats, biased variance, f32.
        mean = jnp.mean(acc, axis=1, keepdims=True)                # (C, 1)
        cen = acc - mean
        var = jnp.mean(cen * cen, axis=1, keepdims=True)           # (C, 1)
        y = cen * lax.rsqrt(var + EPS)
        y = y * gamma_ref[...] + beta_ref[...]

        # Residual add, lane-dense store.
        out_ref[0] = (x + y).astype(out_ref.dtype)

    return kernel


def residual_block_forward(x_nchw, weight_oihw, gamma, beta):
    """x_nchw: (N, C, H, W); weight_oihw: (Cout, Cin, 3, 3); gamma/beta: (Cout,)."""
    N, C, H, W = x_nchw.shape
    cout, cin, kh, kw = weight_oihw.shape
    assert (kh, kw) == (3, 3) and cin == C and cout == C  # residual needs dim_in == dim_out

    HW = H * W
    CP = _round_up(cin, 8)          # pad Cin so every im2col row block is 8-sublane aligned
    K = 9 * CP
    lead = _round_up(W + 1, 128)    # leading zero guard -> 128-aligned interior store
    Lf = lead + HW + W + 1          # flat padded length (trailing guard = W+1)

    # Wrapper does free reshapes only — no transpose / pad HBM passes.
    x_flat = x_nchw.reshape(N, C, HW)

    # Weight -> (Cout, 9*CP): tap-major columns, Cin zero-padded to CP, bf16 for the MXU.
    w_t = jnp.transpose(weight_oihw, (0, 2, 3, 1))                     # (Cout, 3, 3, Cin)
    w_t = jnp.pad(w_t, ((0, 0), (0, 0), (0, 0), (0, CP - cin)))        # (Cout, 3, 3, CP)
    w2 = w_t.reshape(cout, K).astype(jnp.bfloat16)

    gamma2 = gamma.reshape(cout, 1).astype(jnp.float32)
    beta2 = beta.reshape(cout, 1).astype(jnp.float32)

    kernel = _make_kernel(H, W, C, CP, lead)

    out_flat = pl.pallas_call(
        kernel,
        out_shape=jax.ShapeDtypeStruct((N, cout, HW), x_nchw.dtype),
        grid_spec=pltpu.PrefetchScalarGridSpec(
            num_scalar_prefetch=0,
            grid=(N,),
            in_specs=[
                pl.BlockSpec((1, C, HW), lambda n: (n, 0, 0)),    # activation (fetched once per image)
                pl.BlockSpec((cout, K), lambda n: (0, 0)),        # weights  (constant block -> fetched once)
                pl.BlockSpec((cout, 1), lambda n: (0, 0)),        # gamma
                pl.BlockSpec((cout, 1), lambda n: (0, 0)),        # beta
            ],
            out_specs=pl.BlockSpec((1, cout, HW), lambda n: (n, 0, 0)),
            scratch_shapes=[
                pltpu.VMEM((C, Lf), jnp.float32),   # flat zero-guarded image
                pltpu.VMEM((K, HW), jnp.float32),   # im2col matrix
            ],
        ),
        compiler_params=pltpu.CompilerParams(
            dimension_semantics=("parallel",),       # batch axis feeds both v7x TensorCores
            vmem_limit_bytes=32 * 1024 * 1024,
        ),
    )(x_flat, w2, gamma2, beta2)

    # TODO(synk): for large feature maps (e.g. 256x256x64 on v7x's 64 MiB VMEM) add a
    # spatial grid axis with a two-pass (full-image stats, then normalize) structure;
    # the one-image-per-step scheme here is sized for small maps.
    return out_flat.reshape(N, cout, H, W)


def _reference_forward(x_nchw, weight_oihw, gamma, beta):
    """Pure-JAX reference mirroring the PyTorch forward (training-mode InstanceNorm)."""
    y = lax.conv_general_dilated(
        x_nchw, weight_oihw,
        window_strides=(1, 1), padding=((1, 1), (1, 1)),
        dimension_numbers=("NCHW", "OIHW", "NCHW"),
        precision=lax.Precision.HIGHEST,
    )
    mean = jnp.mean(y, axis=(2, 3), keepdims=True)
    var = jnp.mean((y - mean) ** 2, axis=(2, 3), keepdims=True)
    y = (y - mean) * lax.rsqrt(var + EPS)
    y = y * gamma.reshape(1, -1, 1, 1) + beta.reshape(1, -1, 1, 1)
    return x_nchw + y


if __name__ == "__main__":
    key = jax.random.PRNGKey(0)
    k_x, k_w, k_g, k_b = jax.random.split(key, 4)

    N, C, H, W = 2, 4, 16, 16          # dim_in == dim_out == 4

    x = jax.random.normal(k_x, (N, C, H, W), dtype=jnp.float32)
    weight = jax.random.normal(k_w, (C, C, 3, 3), dtype=jnp.float32) * 0.1
    gamma = 1.0 + 0.1 * jax.random.normal(k_g, (C,), dtype=jnp.float32)
    beta = 0.1 * jax.random.normal(k_b, (C,), dtype=jnp.float32)

    out = residual_block_forward(x, weight, gamma, beta)
    out = jax.block_until_ready(out)

    ref = _reference_forward(x, weight, gamma, beta)
    assert out.shape == (N, C, H, W)
    err = float(jnp.max(jnp.abs(out - ref)))
    # The conv operands are evaluated in bf16 (with f32 accumulation) inside the
    # kernel, so allow a bf16-rounding-sized deviation from the f32 reference;
    # structural bugs (wrong tap / mask / norm) would show up as O(0.1-1) errors.
    assert err < 3e-2, err

    print("KERNEL_OK")
</pallas_src>

<mosaic_0001>
module attributes {stable_mosaic.version = 11 : i64} {
  func.func @kernel(%arg0: i32, %arg1: memref<1x4x256xf32, #tpu.memory_space<vmem>>, %arg2: memref<4x72xbf16, #tpu.memory_space<vmem>>, %arg3: memref<4x1xf32, #tpu.memory_space<vmem>>, %arg4: memref<4x1xf32, #tpu.memory_space<vmem>>, %arg5: memref<1x4x256xf32, #tpu.memory_space<vmem>>, %arg6: memref<4x401xf32, #tpu.memory_space<vmem>>, %arg7: memref<72x256xf32, #tpu.memory_space<vmem>>) attributes {dimension_semantics = [#tpu.dimension_semantics<parallel>], iteration_bounds = array<i64: 2>, scalar_prefetch = 0 : i64, scratch_operands = 2 : i64, tpu.core_type = #tpu.core_type<tc>, window_params = [{transform_indices = @transform_0, window_bounds = array<i64: 1, 4, 256>}, {pipeline_mode = #tpu.pipeline_mode<synchronous>, transform_indices = @transform_1, window_bounds = array<i64: 4, 72>}, {pipeline_mode = #tpu.pipeline_mode<synchronous>, transform_indices = @transform_2, window_bounds = array<i64: 4, 1>}, {pipeline_mode = #tpu.pipeline_mode<synchronous>, transform_indices = @transform_3, window_bounds = array<i64: 4, 1>}, {transform_indices = @transform_4, window_bounds = array<i64: 1, 4, 256>}]} {
    %cst = arith.constant 0.000000e+00 : f32
    %0 = vector.broadcast %cst : f32 to vector<4x401xf32>
    %c0 = arith.constant 0 : index
    %c0_0 = arith.constant 0 : index
    %1 = vector.load %arg6[%c0, %c0_0] : memref<4x401xf32, #tpu.memory_space<vmem>>, vector<4x401xf32>
    tpu.vector_store %arg6[%c0, %c0_0], %0 {strides = array<i32>} : memref<4x401xf32, #tpu.memory_space<vmem>>, vector<4x401xf32>,
    %cst_1 = arith.constant 0.000000e+00 : f32
    %2 = vector.broadcast %cst_1 : f32 to vector<72x256xf32>
    %c0_2 = arith.constant 0 : index
    %c0_3 = arith.constant 0 : index
    %3 = vector.load %arg7[%c0_2, %c0_3] : memref<72x256xf32, #tpu.memory_space<vmem>>, vector<72x256xf32>
    tpu.vector_store %arg7[%c0_2, %c0_3], %2 {strides = array<i32>} : memref<72x256xf32, #tpu.memory_space<vmem>>, vector<72x256xf32>,
    %c0_4 = arith.constant 0 : index
    %c0_5 = arith.constant 0 : index
    %c0_6 = arith.constant 0 : index
    %4 = vector.load %arg1[%c0_4, %c0_5, %c0_6] : memref<1x4x256xf32, #tpu.memory_space<vmem>>, vector<1x4x256xf32>
    %5 = vector.shape_cast %4 : vector<1x4x256xf32> to vector<4x256xf32>
    %c0_7 = arith.constant 0 : index
    %c128 = arith.constant 128 : index
    %6 = vector.load %arg6[%c0_7, %c128] : memref<4x401xf32, #tpu.memory_space<vmem>>, vector<4x256xf32>
    tpu.vector_store %arg6[%c0_7, %c128], %5 {strides = array<i32>} : memref<4x401xf32, #tpu.memory_space<vmem>>, vector<4x256xf32>,
    %7 = tpu.iota {dimensions = array<i32: 1>} : vector<1x256xi32>
    %c15_i32 = arith.constant 15 : i32
    %8 = vector.broadcast %c15_i32 : i32 to vector<1x256xi32>
    %9 = arith.andi %7, %8 : vector<1x256xi32>
    %c1_i32 = arith.constant 1 : i32
    %10 = vector.broadcast %c1_i32 : i32 to vector<1x256xi32>
    %11 = arith.cmpi sge, %9, %10 : vector<1x256xi32>
    %c14_i32 = arith.constant 14 : i32
    %12 = vector.broadcast %c14_i32 : i32 to vector<1x256xi32>
    %13 = arith.cmpi sle, %9, %12 : vector<1x256xi32>
    %c0_8 = arith.constant 0 : index
    %c111 = arith.constant 111 : index
    %14 = vector.load %arg6[%c0_8, %c111] : memref<4x401xf32, #tpu.memory_space<vmem>>, vector<4x256xf32>
    %cst_9 = arith.constant 0.000000e+00 : f32
    %15 = vector.shape_cast %11 : vector<1x256xi1> to vector<1x256xi1>
    %16 = vector.broadcast %15 : vector<1x256xi1> to vector<4x256xi1>
    %17 = vector.broadcast %cst_9 : f32 to vector<4x256xf32>
    %18 = arith.select %16, %14, %17 : vector<4x256xi1>, vector<4x256xf32>
    %c0_10 = arith.constant 0 : index
    %c0_11 = arith.constant 0 : index
    %19 = vector.load %arg7[%c0_10, %c0_11] : memref<72x256xf32, #tpu.memory_space<vmem>>, vector<4x256xf32>
    tpu.vector_store %arg7[%c0_10, %c0_11], %18 {strides = array<i32>} : memref<72x256xf32, #tpu.memory_space<vmem>>, vector<4x256xf32>,
    %c0_12 = arith.constant 0 : index
    %c112 = arith.constant 112 : index
    %20 = vector.load %arg6[%c0_12, %c112] : memref<4x401xf32, #tpu.memory_space<vmem>>, vector<4x256xf32>
    %c8 = arith.constant 8 : index
    %c0_13 = arith.constant 0 : index
    %21 = vector.load %arg7[%c8, %c0_13] : memref<72x256xf32, #tpu.memory_space<vmem>>, vector<4x256xf32>
    tpu.vector_store %arg7[%c8, %c0_13], %20 {strides = array<i32>} : memref<72x256xf32, #tpu.memory_space<vmem>>, vector<4x256xf32>,
    %c0_14 = arith.constant 0 : index
    %c113 = arith.constant 113 : index
    %22 = vector.load %arg6[%c0_14, %c113] : memref<4x401xf32, #tpu.memory_space<vmem>>, vector<4x256xf32>
    %cst_15 = arith.constant 0.000000e+00 : f32
    %23 = vector.shape_cast %13 : vector<1x256xi1> to vector<1x256xi1>
    %24 = vector.broadcast %23 : vector<1x256xi1> to vector<4x256xi1>
    %25 = vector.broadcast %cst_15 : f32 to vector<4x256xf32>
    %26 = arith.select %24, %22, %25 : vector<4x256xi1>, vector<4x256xf32>
    %c16 = arith.constant 16 : index
    %c0_16 = arith.constant 0 : index
    %27 = vector.load %arg7[%c16, %c0_16] : memref<72x256xf32, #tpu.memory_space<vmem>>, vector<4x256xf32>
    tpu.vector_store %arg7[%c16, %c0_16], %26 {strides = array<i32>} : memref<72x256xf32, #tpu.memory_space<vmem>>, vector<4x256xf32>,
    %c0_17 = arith.constant 0 : index
    %c127 = arith.constant 127 : index
    %28 = vector.load %arg6[%c0_17, %c127] : memref<4x401xf32, #tpu.memory_space<vmem>>, vector<4x256xf32>
    %cst_18 = arith.constant 0.000000e+00 : f32
    %29 = vector.shape_cast %11 : vector<1x256xi1> to vector<1x256xi1>
    %30 = vector.broadcast %29 : vector<1x256xi1> to vector<4x256xi1>
    %31 = vector.broadcast %cst_18 : f32 to vector<4x256xf32>
    %32 = arith.select %30, %28, %31 : vector<4x256xi1>, vector<4x256xf32>
    %c24 = arith.constant 24 : index
    %c0_19 = arith.constant 0 : index
    %33 = vector.load %arg7[%c24, %c0_19] : memref<72x256xf32, #tpu.memory_space<vmem>>, vector<4x256xf32>
    tpu.vector_store %arg7[%c24, %c0_19], %32 {strides = array<i32>} : memref<72x256xf32, #tpu.memory_space<vmem>>, vector<4x256xf32>,
    %c0_20 = arith.constant 0 : index
    %c128_21 = arith.constant 128 : index
    %34 = vector.load %arg6[%c0_20, %c128_21] : memref<4x401xf32, #tpu.memory_space<vmem>>, vector<4x256xf32>
    %c32 = arith.constant 32 : index
    %c0_22 = arith.constant 0 : index
    %35 = vector.load %arg7[%c32, %c0_22] : memref<72x256xf32, #tpu.memory_space<vmem>>, vector<4x256xf32>
    tpu.vector_store %arg7[%c32, %c0_22], %34 {strides = array<i32>} : memref<72x256xf32, #tpu.memory_space<vmem>>, vector<4x256xf32>,
    %c0_23 = arith.constant 0 : index
    %c129 = arith.constant 129 : index
    %36 = vector.load %arg6[%c0_23, %c129] : memref<4x401xf32, #tpu.memory_space<vmem>>, vector<4x256xf32>
    %cst_24 = arith.constant 0.000000e+00 : f32
    %37 = vector.shape_cast %13 : vector<1x256xi1> to vector<1x256xi1>
    %38 = vector.broadcast %37 : vector<1x256xi1> to vector<4x256xi1>
    %39 = vector.broadcast %cst_24 : f32 to vector<4x256xf32>
    %40 = arith.select %38, %36, %39 : vector<4x256xi1>, vector<4x256xf32>
    %c40 = arith.constant 40 : index
    %c0_25 = arith.constant 0 : index
    %41 = vector.load %arg7[%c40, %c0_25] : memref<72x256xf32, #tpu.memory_space<vmem>>, vector<4x256xf32>
    tpu.vector_store %arg7[%c40, %c0_25], %40 {strides = array<i32>} : memref<72x256xf32, #tpu.memory_space<vmem>>, vector<4x256xf32>,
    %c0_26 = arith.constant 0 : index
    %c143 = arith.constant 143 : index
    %42 = vector.load %arg6[%c0_26, %c143] : memref<4x401xf32, #tpu.memory_space<vmem>>, vector<4x256xf32>
    %cst_27 = arith.constant 0.000000e+00 : f32
    %43 = vector.shape_cast %11 : vector<1x256xi1> to vector<1x256xi1>
    %44 = vector.broadcast %43 : vector<1x256xi1> to vector<4x256xi1>
    %45 = vector.broadcast %cst_27 : f32 to vector<4x256xf32>
    %46 = arith.select %44, %42, %45 : vector<4x256xi1>, vector<4x256xf32>
    %c48 = arith.constant 48 : index
    %c0_28 = arith.constant 0 : index
    %47 = vector.load %arg7[%c48, %c0_28] : memref<72x256xf32, #tpu.memory_space<vmem>>, vector<4x256xf32>
    tpu.vector_store %arg7[%c48, %c0_28], %46 {strides = array<i32>} : memref<72x256xf32, #tpu.memory_space<vmem>>, vector<4x256xf32>,
    %c0_29 = arith.constant 0 : index
    %c144 = arith.constant 144 : index
    %48 = vector.load %arg6[%c0_29, %c144] : memref<4x401xf32, #tpu.memory_space<vmem>>, vector<4x256xf32>
    %c56 = arith.constant 56 : index
    %c0_30 = arith.constant 0 : index
    %49 = vector.load %arg7[%c56, %c0_30] : memref<72x256xf32, #tpu.memory_space<vmem>>, vector<4x256xf32>
    tpu.vector_store %arg7[%c56, %c0_30], %48 {strides = array<i32>} : memref<72x256xf32, #tpu.memory_space<vmem>>, vector<4x256xf32>,
    %c0_31 = arith.constant 0 : index
    %c145 = arith.constant 145 : index
    %50 = vector.load %arg6[%c0_31, %c145] : memref<4x401xf32, #tpu.memory_space<vmem>>, vector<4x256xf32>
    %cst_32 = arith.constant 0.000000e+00 : f32
    %51 = vector.shape_cast %13 : vector<1x256xi1> to vector<1x256xi1>
    %52 = vector.broadcast %51 : vector<1x256xi1> to vector<4x256xi1>
    %53 = vector.broadcast %cst_32 : f32 to vector<4x256xf32>
    %54 = arith.select %52, %50, %53 : vector<4x256xi1>, vector<4x256xf32>
    %c64 = arith.constant 64 : index
    %c0_33 = arith.constant 0 : index
    %55 = vector.load %arg7[%c64, %c0_33] : memref<72x256xf32, #tpu.memory_space<vmem>>, vector<4x256xf32>
    tpu.vector_store %arg7[%c64, %c0_33], %54 {strides = array<i32>} : memref<72x256xf32, #tpu.memory_space<vmem>>, vector<4x256xf32>,
    %c0_34 = arith.constant 0 : index
    %c0_35 = arith.constant 0 : index
    %56 = vector.load %arg2[%c0_34, %c0_35] : memref<4x72xbf16, #tpu.memory_space<vmem>>, vector<4x72xbf16>
    %c0_36 = arith.constant 0 : index
    %c0_37 = arith.constant 0 : index
    %57 = vector.load %arg7[%c0_36, %c0_37] : memref<72x256xf32, #tpu.memory_space<vmem>>, vector<72x256xf32>
    %58 = arith.truncf %57 : vector<72x256xf32> to vector<72x256xbf16>
    %cst_38 = arith.constant dense<0.000000e+00> : vector<4x256xf32>
    %59 = tpu.matmul %56, %58, %cst_38 {dimension_numbers = #tpu.dot_dimension_numbers<[1], [0], [0], [1], [0, 0, 1, 1], [], []>} : vector<4x72xbf16>, vector<72x256xbf16>, vector<4x256xf32> -> vector<4x256xf32>
    %cst_39 = arith.constant dense<0.000000e+00> : vector<4xf32>
    %60 = vector.multi_reduction <add>, %59, %cst_39 [1] : vector<4x256xf32> to vector<4xf32>
    %61 = vector.shape_cast %60 : vector<4xf32> to vector<4x1xf32>
    %cst_40 = arith.constant 2.560000e+02 : f32
    %62 = vector.broadcast %cst_40 : f32 to vector<4x1xf32>
    %63 = arith.divf %61, %62 : vector<4x1xf32>
    %64 = vector.broadcast %63 : vector<4x1xf32> to vector<4x256xf32>
    %65 = arith.subf %59, %64 : vector<4x256xf32>
    %66 = arith.mulf %65, %65 : vector<4x256xf32>
    %cst_41 = arith.constant dense<0.000000e+00> : vector<4xf32>
    %67 = vector.multi_reduction <add>, %66, %cst_41 [1] : vector<4x256xf32> to vector<4xf32>
    %68 = vector.shape_cast %67 : vector<4xf32> to vector<4x1xf32>
    %cst_42 = arith.constant 2.560000e+02 : f32
    %69 = vector.broadcast %cst_42 : f32 to vector<4x1xf32>
    %70 = arith.divf %68, %69 : vector<4x1xf32>
    %cst_43 = arith.constant 9.99999974E-6 : f32
    %71 = vector.broadcast %cst_43 : f32 to vector<4x1xf32>
    %72 = arith.addf %70, %71 : vector<4x1xf32>
    %73 = math.rsqrt %72 : vector<4x1xf32>
    %74 = vector.broadcast %73 : vector<4x1xf32> to vector<4x256xf32>
    %75 = arith.mulf %65, %74 : vector<4x256xf32>
    %c0_44 = arith.constant 0 : index
    %c0_45 = arith.constant 0 : index
    %76 = vector.load %arg3[%c0_44, %c0_45] : memref<4x1xf32, #tpu.memory_space<vmem>>, vector<4x1xf32>
    %77 = vector.broadcast %76 : vector<4x1xf32> to vector<4x256xf32>
    %78 = arith.mulf %75, %77 : vector<4x256xf32>
    %c0_46 = arith.constant 0 : index
    %c0_47 = arith.constant 0 : index
    %79 = vector.load %arg4[%c0_46, %c0_47] : memref<4x1xf32, #tpu.memory_space<vmem>>, vector<4x1xf32>
    %80 = vector.broadcast %79 : vector<4x1xf32> to vector<4x256xf32>
    %81 = arith.addf %78, %80 : vector<4x256xf32>
    %82 = arith.addf %5, %81 : vector<4x256xf32>
    %c0_48 = arith.constant 0 : index
    %c0_49 = arith.constant 0 : index
    %c0_50 = arith.constant 0 : index
    %83 = vector.load %arg5[%c0_48, %c0_49, %c0_50] : memref<1x4x256xf32, #tpu.memory_space<vmem>>, vector<1x4x256xf32>
    %84 = vector.shape_cast %83 : vector<1x4x256xf32> to vector<4x256xf32>
    %85 = vector.shape_cast %82 : vector<4x256xf32> to vector<1x4x256xf32>
    tpu.vector_store %arg5[%c0_48, %c0_49, %c0_50], %85 {strides = array<i32>} : memref<1x4x256xf32, #tpu.memory_space<vmem>>, vector<1x4x256xf32>,
    return
  }
  func.func @transform_0(%arg0: i32) -> (i32, i32, i32) {
    %c0_i32 = arith.constant 0 : i32
    %c0_i32_0 = arith.constant 0 : i32
    %c0_i32_1 = arith.constant 0 : i32
    return %arg0, %c0_i32, %c0_i32_0 : i32, i32, i32
  }
  func.func @transform_1(%arg0: i32) -> (i32, i32) {
    %c0_i32 = arith.constant 0 : i32
    %c0_i32_0 = arith.constant 0 : i32
    %c0_i32_1 = arith.constant 0 : i32
    return %c0_i32, %c0_i32_0 : i32, i32
  }
  func.func @transform_2(%arg0: i32) -> (i32, i32) {
    %c0_i32 = arith.constant 0 : i32
    %c0_i32_0 = arith.constant 0 : i32
    %c0_i32_1 = arith.constant 0 : i32
    return %c0_i32, %c0_i32_0 : i32, i32
  }
  func.func @transform_3(%arg0: i32) -> (i32, i32) {
    %c0_i32 = arith.constant 0 : i32
    %c0_i32_0 = arith.constant 0 : i32
    %c0_i32_1 = arith.constant 0 : i32
    return %c0_i32, %c0_i32_0 : i32, i32
  }
  func.func @transform_4(%arg0: i32) -> (i32, i32, i32) {
    %c0_i32 = arith.constant 0 : i32
    %c0_i32_0 = arith.constant 0 : i32
    %c0_i32_1 = arith.constant 0 : i32
    return %arg0, %c0_i32, %c0_i32_0 : i32, i32, i32
  }
}

</mosaic_0001>

<llo_original>
// kernel: tpu_custom_call.1
$region0: #{tpu_custom_call.1}
  #allocation0 [shape = 'u32[]', space=smem, size = 0x4, offset = 0x4, fixed_abs, tag = 'smem constant byte address 0x4 - core index']
  #allocation1 [shape = 'u32[144,128]{1,0:T(1,128)}', space=vmem, size = 0x12000, scoped, tag = 'internal scratch']
  #allocation2 [shape = 'f32[4,401]{1,0:T(4,128)}', space=vmem, size = 0x2000, scoped, tag = 'scratch operand']
  #allocation3 [shape = 'f32[72,256]{1,0:T(8,128)}', space=vmem, size = 0x12000, scoped, tag = 'scratch operand']
  %s0 = inlined_call_operand.hbm [shape: f32[2,4,256], index: 0, kind: input, shape index: {}]
  %s1 = inlined_call_operand.vmem [shape: bf16[4,72], index: 1, kind: input, shape index: {}]
  %s2 = inlined_call_operand.vmem [shape: f32[4,1], index: 2, kind: input, shape index: {}]
  %s3 = inlined_call_operand.vmem [shape: f32[4,1], index: 3, kind: input, shape index: {}]
  %s4 = inlined_call_operand.hbm [shape: f32[2,4,256], index: 4, kind: output, shape index: {}]
  %s5 = sld [smem:[#allocation0]]
  $region53: #{tpu_custom_call.1} parent=0
    _
  %s7 = ssub.s32 1, %s5
  %s8 = scalar_select 0, %s7, %s5
  $region1: #{tpu_custom_call.1} parent=0
    #allocation4 [shape = 'u8[8192]{0}', space=vmem, size = 0x2000, scoped, tag = 'input window, operand 0']
    #allocation5 [shape = 's32[2]{0}', space=sflag, size = 0x8, scoped, tag = 'scoped memory for tpu_custom_call.1']
    #allocation6 [shape = 's32[2]{0}', space=sflag, size = 0x8, scoped, tag = 'scoped memory for tpu_custom_call.1']
    #allocation7 [shape = 'u8[8192]{0}', space=vmem, size = 0x2000, scoped, tag = 'output window, operand 0']
    %9 = vsyncpa [#allocation5], 0
    %s10 = scalar_lea.sflag [#allocation5], 1
    %11 = vsyncpa %s10, 0
    %12 = vsyncpa [#allocation6], 0
    %s13 = scalar_lea.sflag [#allocation6], 1
    %14 = vsyncpa %s13, 0
    loop: start=0, step=1, limit=4
    $region2: #{tpu_custom_call.1} parent=1 // loop_pre_header
      _
    $region3: #{tpu_custom_call.1} parent=1 // loop_header
      %s16 = sphi 0, %s20
      %p17 = scmp.ge.s32.totalorder %s16, 4
      %s26 = sphi 0, %s28
      %s29 = sphi 0, %s26
      %s30 = sphi 0, %s29
      %s46 = sphi 0, %s30
      %s50 = sphi 0, %s50
      %s52 = sphi 0, %s50
      %s53 = sphi 0, %s52
      %s67 = sphi 0, %s53
      %s71 = sphi 0, %s71
      %s73 = sphi 0, %s71
      %s74 = sphi 0, %s73
      %s88 = sphi 0, %s74
      %s92 = sphi 0, %s92
      %s94 = sphi 0, %s92
      %s95 = sphi 0, %s94
      %s109 = sphi 0, %s95
      %s115 = sphi 0, %s117
      %s118 = sphi 0, %s115
      %s119 = sphi 0, %s118
      %s135 = sphi 0, %s119
    $region4: #{tpu_custom_call.1} parent=1 // loop_header_branch
      %19 = sbr.rel (%p17) target = $region8
    $region5: #{tpu_custom_call.1} parent=1 // loop_body
      %s21 = ssub.s32 %s16, 1
      %s22 = ssub.s32 %s16, 2
      %s23 = sadd.s32 %s16, 1
      %s24 = ssub.s32 %s16, %s23
      %p25 = scmp.eq.s32.totalorder %s24, 0
      %s27 = sadd.s32 %s26, 1
      %s28 = scalar_select %p25, %s26, %s27
      %p31 = pneg %p25
      %p32 = scmp.eq.s32.totalorder %s16, 1
      %p33 = por %p31, %p32
      %p34 = scmp.ne.s32.totalorder %s26, %s29
      %p35 = scmp.eq.s32.totalorder %s16, 0
      %p36 = por %p34, %p35
      %p37 = scmp.ne.s32.totalorder %s26, %s29
      %p38 = scmp.eq.s32.totalorder %s21, 1
      %p39 = por %p37, %p38
      %p40 = scmp.ne.s32.totalorder %s29, %s30
      %p41 = scmp.eq.s32.totalorder %s21, 0
      %p42 = por %p40, %p41
      %p43 = scmp.ne.s32.totalorder %s29, %s30
      %p44 = scmp.eq.s32.totalorder %s22, 1
      %p45 = por %p43, %p44
      %p47 = scmp.ne.s32.totalorder %s30, %s46
      %p48 = scmp.eq.s32.totalorder %s22, 0
      %p49 = por %p47, %p48
      %s51 = sadd.s32 %s50, 1
      %p54 = scmp.eq.s32.totalorder %s16, 1
      %p55 = scmp.ne.s32.totalorder %s50, %s52
      %p56 = scmp.eq.s32.totalorder %s16, 0
      %p57 = por %p55, %p56
      %p58 = scmp.ne.s32.totalorder %s50, %s52
      %p59 = scmp.eq.s32.totalorder %s21, 1
      %p60 = por %p58, %p59
      %p61 = scmp.ne.s32.totalorder %s52, %s53
      %p62 = scmp.eq.s32.totalorder %s21, 0
      %p63 = por %p61, %p62
      %p64 = scmp.ne.s32.totalorder %s52, %s53
      %p65 = scmp.eq.s32.totalorder %s22, 1
      %p66 = por %p64, %p65
      %p68 = scmp.ne.s32.totalorder %s53, %s67
      %p69 = scmp.eq.s32.totalorder %s22, 0
      %p70 = por %p68, %p69
      %s72 = sadd.s32 %s71, 1
      %p75 = scmp.eq.s32.totalorder %s16, 1
      %p76 = scmp.ne.s32.totalorder %s71, %s73
      %p77 = scmp.eq.s32.totalorder %s16, 0
      %p78 = por %p76, %p77
      %p79 = scmp.ne.s32.totalorder %s71, %s73
      %p80 = scmp.eq.s32.totalorder %s21, 1
      %p81 = por %p79, %p80
      %p82 = scmp.ne.s32.totalorder %s73, %s74
      %p83 = scmp.eq.s32.totalorder %s21, 0
      %p84 = por %p82, %p83
      %p85 = scmp.ne.s32.totalorder %s73, %s74
      %p86 = scmp.eq.s32.totalorder %s22, 1
      %p87 = por %p85, %p86
      %p89 = scmp.ne.s32.totalorder %s74, %s88
      %p90 = scmp.eq.s32.totalorder %s22, 0
      %p91 = por %p89, %p90
      %s93 = sadd.s32 %s92, 1
      %p96 = scmp.eq.s32.totalorder %s16, 1
      %p97 = scmp.ne.s32.totalorder %s92, %s94
      %p98 = scmp.eq.s32.totalorder %s16, 0
      %p99 = por %p97, %p98
      %p100 = scmp.ne.s32.totalorder %s92, %s94
      %p101 = scmp.eq.s32.totalorder %s21, 1
      %p102 = por %p100, %p101
      %p103 = scmp.ne.s32.totalorder %s94, %s95
      %p104 = scmp.eq.s32.totalorder %s21, 0
      %p105 = por %p103, %p104
      %p106 = scmp.ne.s32.totalorder %s94, %s95
      %p107 = scmp.eq.s32.totalorder %s22, 1
      %p108 = por %p106, %p107
      %p110 = scmp.ne.s32.totalorder %s95, %s109
      %p111 = scmp.eq.s32.totalorder %s22, 0
      %p112 = por %p110, %p111
      %s113 = ssub.s32 %s16, %s23
      %p114 = scmp.eq.s32.totalorder %s113, 0
      %s116 = sadd.s32 %s115, 1
      %s117 = scalar_select %p114, %s115, %s116
      %p120 = pneg %p114
      %p121 = scmp.eq.s32.totalorder %s16, 1
      %p122 = por %p120, %p121
      %p123 = scmp.ne.s32.totalorder %s115, %s118
      %p124 = scmp.eq.s32.totalorder %s16, 0
      %p125 = por %p123, %p124
      %p126 = scmp.ne.s32.totalorder %s115, %s118
      %p127 = scmp.eq.s32.totalorder %s21, 1
      %p128 = por %p126, %p127
      %p129 = scmp.ne.s32.totalorder %s118, %s119
      %p130 = scmp.eq.s32.totalorder %s21, 0
      %p131 = por %p129, %p130
      %p132 = scmp.ne.s32.totalorder %s118, %s119
      %p133 = scmp.eq.s32.totalorder %s22, 1
      %p134 = por %p132, %p133
      %p136 = scmp.ne.s32.totalorder %s119, %s135
      %p137 = scmp.eq.s32.totalorder %s22, 0
      %p138 = por %p136, %p137
      %p139 = scmp.le.s32.totalorder 1, %s16
      %p140 = scmp.lt.s32.totalorder %s16, 3
      %p141 = pnand %p139, %p140
      %p142 = pneg %p141
      // Predicated region
      $region9: #{tpu_custom_call.1} parent=5 // pred_check
        _
      $region10: #{tpu_custom_call.1} parent=5 // pred_check_branch
        %144 = sbr.rel (%p141) target = $region12
      $region11: #{tpu_custom_call.1} parent=5 // pred_region
        %s145 = ssub.s32 %s16, 1
        // Predicated region
        $region13: #{tpu_custom_call.1} parent=11 // pred_check
          %p146 = pneg %p63
        $region14: #{tpu_custom_call.1} parent=11 // pred_check_branch
          %148 = sbr.rel (%p146) target = $region16
        $region15: #{tpu_custom_call.1} parent=11 // pred_region
          _
        $region16: #{tpu_custom_call.1} parent=11 // pred_fallthru
          _
        // Predicated region
        $region17: #{tpu_custom_call.1} parent=11 // pred_check
          %p149 = pneg %p84
        $region18: #{tpu_custom_call.1} parent=11 // pred_check_branch
          %151 = sbr.rel (%p149) target = $region20
        $region19: #{tpu_custom_call.1} parent=11 // pred_region
          _
        $region20: #{tpu_custom_call.1} parent=11 // pred_fallthru
          _
        // Predicated region
        $region21: #{tpu_custom_call.1} parent=11 // pred_check
          %p152 = pneg %p105
        $region22: #{tpu_custom_call.1} parent=11 // pred_check_branch
          %154 = sbr.rel (%p152) target = $region24
        $region23: #{tpu_custom_call.1} parent=11 // pred_region
          _
        $region24: #{tpu_custom_call.1} parent=11 // pred_fallthru
          _
      $region12: #{tpu_custom_call.1} parent=5 // pred_fallthru
        _
      %p155 = scmp.lt.s32.totalorder %s16, 2
      // Predicated region
      $region25: #{tpu_custom_call.1} parent=5 // pred_check
        %p156 = pneg %p155
      $region26: #{tpu_custom_call.1} parent=5 // pred_check_branch
        %158 = sbr.rel (%p156) target = $region28
      $region27: #{tpu_custom_call.1} parent=5 // pred_region
        // Predicated region
        $region29: #{tpu_custom_call.1} parent=27 // pred_check
          %p159 = pneg %p36
        $region30: #{tpu_custom_call.1} parent=27 // pred_check_branch
          %161 = sbr.rel (%p159) target = $region32
        $region31: #{tpu_custom_call.1} parent=27 // pred_region
          %s162 = sand.u32 %s26, 1
          %s163 = scalar_lea.sflag [#allocation5], %s162
          %s164 = sand.u32 %s26, 1
          %s165 = smul.addr %s164, 8
          %s166 = scalar_lea.vmem [#allocation4], %s165
          %s168 = ssub.s32 128, 128
          %169 = vsyncadd %s163, %s168
          %s170 = smul.addr %s16, 2
          %s171 = smul.addr %s170, 64
          %s172 = scalar_lea.hbm %s0, %s171
          %s174 = sshll.u32 %s166, 4
          %s175 = int_to_ptr.vmem [resolvable:$true] %s174
          %177 = dma.hbm_to_vmem [thread:$0]  %s172, 128, %s175, %s163
        $region32: #{tpu_custom_call.1} parent=27 // pred_fallthru
          _
      $region28: #{tpu_custom_call.1} parent=5 // pred_fallthru
        _
      %p178 = scmp.le.s32.totalorder 1, %s16
      %p179 = scmp.lt.s32.totalorder %s16, 3
      %p180 = pnand %p178, %p179
      %p181 = pneg %p180
      // Predicated region
      $region33: #{tpu_custom_call.1} parent=5 // pred_check
        _
      $region34: #{tpu_custom_call.1} parent=5 // pred_check_branch
        %183 = sbr.rel (%p180) target = $region36
      $region35: #{tpu_custom_call.1} parent=5 // pred_region
        %s184 = ssub.s32 %s16, 1
        %s185 = sand.u32 %s29, 1
        %s186 = scalar_lea.sflag [#allocation5], %s185
        %s187 = sand.u32 %s29, 1
        %s188 = smul.addr %s187, 8
        %s189 = scalar_lea.vmem [#allocation4], %s188
        // Predicated region
        $region37: #{tpu_custom_call.1} parent=35 // pred_check
          %p190 = pneg %p42
        $region38: #{tpu_custom_call.1} parent=35 // pred_check_branch
          %192 = sbr.rel (%p190) target = $region40
        $region39: #{tpu_custom_call.1} parent=35 // pred_region
          %193 = dma.done %s186, 128
        $region40: #{tpu_custom_call.1} parent=35 // pred_fallthru
          _
        %s194 = sand.u32 %s29, 1
        %s195 = scalar_lea.sflag [#allocation5], %s194
        %s196 = sand.u32 %s29, 1
        %s197 = smul.addr %s196, 8
        %s198 = scalar_lea.vmem [#allocation4], %s197
        %p199 = pneg %p42
        %p200 = pneg %p39
        %p201 = pneg %p63
        %p202 = pneg %p60
        %p203 = pneg %p84
        %p204 = pneg %p81
        %p205 = pneg %p105
        %p206 = pneg %p102
        %p207 = pneg %p131
        %p208 = pneg %p128
        %s209 = sand.u32 %s118, 1
        %s210 = scalar_lea.sflag [#allocation6], %s209
        %s211 = sand.u32 %s118, 1
        %s212 = smul.addr %s211, 8
        %s213 = scalar_lea.vmem [#allocation7], %s212
        %215 = vst [vmem:[#allocation2] sm:$0xff] 0.0
        %vm216 = vcmask 1043456
        %vm217 = vcmask 138244
        %vm218 = vmor %vm217, %vm216
        %219 = vst.msk [vmem:[#allocation2 + $0x8] sm:$0xff] %vm218, 0.0
        %220 = vst [vmem:[#allocation3] sm:$0xff] 0.0
        %221 = vst [vmem:[#allocation3 + $0x8] sm:$0xff] 0.0
        %222 = vst [vmem:[#allocation3 + $0x10] sm:$0xff] 0.0
        %223 = vst [vmem:[#allocation3 + $0x18] sm:$0xff] 0.0
        %224 = vst [vmem:[#allocation3 + $0x20] sm:$0xff] 0.0
        %225 = vst [vmem:[#allocation3 + $0x28] sm:$0xff] 0.0
        %226 = vst [vmem:[#allocation3 + $0x30] sm:$0xff] 0.0
        %227 = vst [vmem:[#allocation3 + $0x38] sm:$0xff] 0.0
        %228 = vst [vmem:[#allocation3 + $0x40] sm:$0xff] 0.0
        %229 = vst [vmem:[#allocation3 + $0x48] sm:$0xff] 0.0
        %230 = vst [vmem:[#allocation3 + $0x50] sm:$0xff] 0.0
        %231 = vst [vmem:[#allocation3 + $0x58] sm:$0xff] 0.0
        %232 = vst [vmem:[#allocation3 + $0x60] sm:$0xff] 0.0
        %233 = vst [vmem:[#allocation3 + $0x68] sm:$0xff] 0.0
        %234 = vst [vmem:[#allocation3 + $0x70] sm:$0xff] 0.0
        %235 = vst [vmem:[#allocation3 + $0x78] sm:$0xff] 0.0
        %236 = vst [vmem:[#allocation3 + $0x80] sm:$0xff] 0.0
        %237 = vst [vmem:[#allocation3 + $0x88] sm:$0xff] 0.0
        %v238 = vld [vmem:[%s189] sm:$0xff]
        %239 = vst [vmem:[#allocation2 + $0x4] sm:$0xff] %v238
        %v240 = vlaneseq
        %v241 = vand.u32 %v240, 127
        %v242 = vadd.s32 %v241, 128
        %v243 = vand.u32 %v241, 15
        %v244 = vand.u32 %v242, 15
        %vm245 = vcmp.ge.s32.totalorder %v243, 1
        %vm246 = vcmp.ge.s32.totalorder %v244, 1
        %vm247 = vcmp.le.s32.totalorder %v243, 14
        %vm248 = vcmp.le.s32.totalorder %v244, 14
        %v249 = vld [vmem:[#allocation2] sm:$0xff]
        %v250 = vld [vmem:[#allocation2 + $0x8] sm:$0xf]
        %v251 = vsel %vm245, 1, 0
        %v252 = vsel %vm246, 1, 0
        %vm253 = vcmp.eq.s32.totalorder %v251, 1
        %vm254 = vcmp.eq.s32.totalorder %v252, 1
        %v257 = vcombine.high %v249, %v249
        %258 = vrot.lane.b32.xlu0 %v249, 17
        %v259 = vpop.permute.xlu0 %258
        %260 = vrot.lane.b32.xlu0 %v257, 17
        %v261 = vpop.permute.xlu0 %260
        %262 = vrot.lane.b32.xlu0 %v250, 17
        %v263 = vpop.permute.xlu0 %262
        %vm264 = vcmask 138240
        %v265 = vsel %vm264, %v259, %v261
        %v266 = vsel %vm264, %v261, %v263
        %v269 = vsel %vm253, %v265, 0.0
        %v270 = vsel %vm254, %v266, 0.0
        %271 = vst [vmem:[#allocation3] sm:$0xf] %v269
        %272 = vst [vmem:[#allocation3 + $0x8] sm:$0xf] %v270
        %v273 = vld [vmem:[#allocation2] sm:$0xff]
        %v274 = vld [vmem:[#allocation2 + $0x8] sm:$0xf]
        %v277 = vcombine.high %v273, %v273
        %278 = vrot.lane.b32.xlu0 %v273, 16
        %v279 = vpop.permute.xlu0 %278
        %280 = vrot.lane.b32.xlu0 %v277, 16
        %v281 = vpop.permute.xlu0 %280
        %282 = vrot.lane.b32.xlu0 %v274, 16
        %v283 = vpop.permute.xlu0 %282
        %vm284 = vcmask 130048
        %v285 = vsel %vm284, %v279, %v281
        %v286 = vsel %vm284, %v281, %v283
        %289 = vst [vmem:[#allocation3 + $0x10] sm:$0xf] %v285
        %290 = vst [vmem:[#allocation3 + $0x18] sm:$0xf] %v286
        %v291 = vld [vmem:[#allocation2] sm:$0xff]
        %v292 = vld [vmem:[#allocation2 + $0x8] sm:$0xf]
        %v293 = vsel %vm247, 1, 0
        %v294 = vsel %vm248, 1, 0
        %vm295 = vcmp.eq.s32.totalorder %v293, 1
        %vm296 = vcmp.eq.s32.totalorder %v294, 1
        %v299 = vcombine.high %v291, %v291
        %300 = vrot.lane.b32.xlu0 %v291, 15
        %v301 = vpop.permute.xlu0 %300
        %302 = vrot.lane.b32.xlu0 %v299, 15
        %v303 = vpop.permute.xlu0 %302
        %304 = vrot.lane.b32.xlu0 %v292, 15
        %v305 = vpop.permute.xlu0 %304
        %vm306 = vcmask 121856
        %v307 = vsel %vm306, %v301, %v303
        %v308 = vsel %vm306, %v303, %v305
        %v311 = vsel %vm295, %v307, 0.0
        %v312 = vsel %vm296, %v308, 0.0
        %313 = vst [vmem:[#allocation3 + $0x20] sm:$0xf] %v311
        %314 = vst [vmem:[#allocation3 + $0x28] sm:$0xf] %v312
        %v315 = vld [vmem:[#allocation2] sm:$0xff]
        %v316 = vld [vmem:[#allocation2 + $0x8] sm:$0xf]
        %v319 = vcombine.high %v315, %v315
        %320 = vrot.lane.b32.xlu0 %v315, 1
        %v321 = vpop.permute.xlu0 %320
        %322 = vrot.lane.b32.xlu0 %v319, 1
        %v323 = vpop.permute.xlu0 %322
        %324 = vrot.lane.b32.xlu0 %v316, 1
        %v325 = vpop.permute.xlu0 %324
        %vm326 = vcmask 7168
        %v327 = vsel %vm326, %v321, %v323
        %v328 = vsel %vm326, %v323, %v325
        %v331 = vsel %vm253, %v327, 0.0
        %v332 = vsel %vm254, %v328, 0.0
        %333 = vst [vmem:[#allocation3 + $0x30] sm:$0xf] %v331
        %334 = vst [vmem:[#allocation3 + $0x38] sm:$0xf] %v332
        %v335 = vld [vmem:[#allocation2 + $0x4] sm:$0xff]
        %v337 = vcombine.high %v335, %v335
        %339 = vst [vmem:[#allocation3 + $0x40] sm:$0xf] %v335
        %340 = vst [vmem:[#allocation3 + $0x48] sm:$0xf] %v337
        %v341 = vld [vmem:[#allocation2 + $0x4] sm:$0xff]
        %v342 = vld [vmem:[#allocation2 + $0xc] sm:$0xf]
        %v345 = vcombine.high %v341, %v341
        %346 = vrot.lane.b32.xlu0 %v341, 127
        %v347 = vpop.permute.xlu0 %346
        %348 = vrot.lane.b32.xlu0 %v345, 127
        %v349 = vpop.permute.xlu0 %348
        %350 = vrot.lane.b32.xlu0 %v342, 127
        %v351 = vpop.permute.xlu0 %350
        %vm352 = vcmask 1039360
        %v353 = vsel %vm352, %v347, %v349
        %v354 = vsel %vm352, %v349, %v351
        %v357 = vsel %vm295, %v353, 0.0
        %v358 = vsel %vm296, %v354, 0.0
        %359 = vst [vmem:[#allocation3 + $0x50] sm:$0xf] %v357
        %360 = vst [vmem:[#allocation3 + $0x58] sm:$0xf] %v358
        %v361 = vld [vmem:[#allocation2 + $0x4] sm:$0xff]
        %v362 = vld [vmem:[#allocation2 + $0xc] sm:$0xf]
        %v365 = vcombine.high %v361, %v361
        %366 = vrot.lane.b32.xlu0 %v361, 113
        %v367 = vpop.permute.xlu0 %366
        %368 = vrot.lane.b32.xlu0 %v365, 113
        %v369 = vpop.permute.xlu0 %368
        %370 = vrot.lane.b32.xlu0 %v362, 113
        %v371 = vpop.permute.xlu0 %370
        %vm372 = vcmask 924672
        %v373 = vsel %vm372, %v367, %v369
        %v374 = vsel %vm372, %v369, %v371
        %v377 = vsel %vm253, %v373, 0.0
        %v378 = vsel %vm254, %v374, 0.0
        %379 = vst [vmem:[#allocation3 + $0x60] sm:$0xf] %v377
        %380 = vst [vmem:[#allocation3 + $0x68] sm:$0xf] %v378
        %v381 = vld [vmem:[#allocation2 + $0x4] sm:$0xff]
        %v382 = vld [vmem:[#allocation2 + $0xc] sm:$0xf]
        %v385 = vcombine.high %v381, %v381
        %386 = vrot.lane.b32.xlu0 %v381, 112
        %v387 = vpop.permute.xlu0 %386
        %388 = vrot.lane.b32.xlu0 %v385, 112
        %v389 = vpop.permute.xlu0 %388
        %390 = vrot.lane.b32.xlu0 %v382, 112
        %v391 = vpop.permute.xlu0 %390
        %vm392 = vcmask 916480
        %v393 = vsel %vm392, %v387, %v389
        %v394 = vsel %vm392, %v389, %v391
        %397 = vst [vmem:[#allocation3 + $0x70] sm:$0xf] %v393
        %398 = vst [vmem:[#allocation3 + $0x78] sm:$0xf] %v394
        %v399 = vld [vmem:[#allocation2 + $0x4] sm:$0xff]
        %v400 = vld [vmem:[#allocation2 + $0xc] sm:$0xf]
        %v403 = vcombine.high %v399, %v399
        %404 = vrot.lane.b32.xlu0 %v399, 111
        %v405 = vpop.permute.xlu0 %404
        %406 = vrot.lane.b32.xlu0 %v403, 111
        %v407 = vpop.permute.xlu0 %406
        %408 = vrot.lane.b32.xlu0 %v400, 111
        %v409 = vpop.permute.xlu0 %408
        %vm410 = vcmask 908288
        %v411 = vsel %vm410, %v405, %v407
        %v412 = vsel %vm410, %v407, %v409
        %v415 = vsel %vm295, %v411, 0.0
        %v416 = vsel %vm296, %v412, 0.0
        %417 = vst [vmem:[#allocation3 + $0x80] sm:$0xf] %v415
        %418 = vst [vmem:[#allocation3 + $0x88] sm:$0xf] %v416
        %v419 = vld [vmem:[%s1] sm:$0x3]
        %v420 = vld [vmem:[#allocation3] sm:$0xff]
        %v421 = vld [vmem:[#allocation3 + $0x8] sm:$0xff]
        %v422 = vld [vmem:[#allocation3 + $0x10] sm:$0xff]
        %v423 = vld [vmem:[#allocation3 + $0x18] sm:$0xff]
        %v424 = vld [vmem:[#allocation3 + $0x20] sm:$0xff]
        %v425 = vld [vmem:[#allocation3 + $0x28] sm:$0xff]
        %v426 = vld [vmem:[#allocation3 + $0x30] sm:$0xff]
        %v427 = vld [vmem:[#allocation3 + $0x38] sm:$0xff]
        %v428 = vld [vmem:[#allocation3 + $0x40] sm:$0xff]
        %v429 = vld [vmem:[#allocation3 + $0x48] sm:$0xff]
        %v430 = vld [vmem:[#allocation3 + $0x50] sm:$0xff]
        %v431 = vld [vmem:[#allocation3 + $0x58] sm:$0xff]
        %v432 = vld [vmem:[#allocation3 + $0x60] sm:$0xff]
        %v433 = vld [vmem:[#allocation3 + $0x68] sm:$0xff]
        %v434 = vld [vmem:[#allocation3 + $0x70] sm:$0xff]
        %v435 = vld [vmem:[#allocation3 + $0x78] sm:$0xff]
        %v436 = vld [vmem:[#allocation3 + $0x80] sm:$0xff]
        %v437 = vld [vmem:[#allocation3 + $0x88] sm:$0xff]
        %v438 = vpack.c.bf16 %v422, %v420
        %v439 = vpack.c.bf16 %v423, %v421
        %v440 = vpack.c.bf16 %v426, %v424
        %v441 = vpack.c.bf16 %v427, %v425
        %v442 = vpack.c.bf16 %v430, %v428
        %v443 = vpack.c.bf16 %v431, %v429
        %v444 = vpack.c.bf16 %v434, %v432
        %v445 = vpack.c.bf16 %v435, %v433
        %v446 = vpack.c.bf16 %v436, %v436
        %v447 = vpack.c.bf16 %v437, %v437
        %vm448 = vcmask 588800
        %v450 = vsel %vm448, %v419, 0
        %v453 = vsel %vm216, %v446, 0
        %v456 = vsel %vm216, %v447, 0
        %458 = vmatprep.subr.bf16.mxu0 %v439
        %459 = vmatpush1.bf16.msra.mxu0 %v438
        %460 = vmatprep.subr.bf16.mxu0 %v441
        %461 = vmatpush1.bf16.msra.mxu0 %v440
        %462 = vmatprep.subr.bf16.mxu0 %v443
        %463 = vmatpush1.bf16.msra.mxu0 %v442
        %464 = vmatprep.subr.bf16.mxu0 %v445
        %465 = vmatpush1.bf16.msra.mxu0 %v444
        %466 = vmatprep.subr.bf16.mxu0 %v456
        %467 = vmatpush1.bf16.msra.mxu0 %v453
        %468 = vmatprep.subr.bf16.mxu0 0
        %469 = vmatpush1.bf16.msra.mxu0 0
        %470 = vmatprep.subr.bf16.mxu0 0
        %471 = vmatpush1.bf16.msra.mxu0 0
        %472 = vmatprep.subr.bf16.mxu0 0
        %473 = vmatpush1.bf16.msra.mxu0 0
        %474 = vmatprep.subr.bf16.mxu0 0
        %475 = vmatpush1.bf16.msra.mxu0 0
        %476 = vmatprep.subr.bf16.mxu0 0
        %477 = vmatpush1.bf16.msra.mxu0 0
        %478 = vmatprep.subr.bf16.mxu0 0
        %479 = vmatpush1.bf16.msra.mxu0 0
        %480 = vmatprep.subr.bf16.mxu0 0
        %481 = vmatpush1.bf16.msra.mxu0 0
        %482 = vmatprep.subr.bf16.mxu0 0
        %483 = vmatpush1.bf16.msra.mxu0 0
        %484 = vmatprep.subr.bf16.mxu0 0
        %485 = vmatpush1.bf16.msra.mxu0 0
        %486 = vmatprep.subr.bf16.mxu0 0
        %487 = vmatpush1.bf16.msra.mxu0 0
        %488 = vmatprep.subr.bf16.mxu0 0
        %489 = vmatpush1.bf16.msra.mxu0 0
        %490 = vmatprep.mubr.bf16.mxu0 0
        %491 = vmatmul.mubr.bf16.gmra.mrb[0].mxu0 %v450
        %v492 = vpop.f32.mrb[0].mxu0
        %v493 = vadd.f32 0.0, %v492
        %v494 = vpop.f32.mrb[0].mxu0
        %v495 = vadd.f32 0.0, %v494
        %v496 = vpop.f32.mrb[0].mxu0
        %v497 = vpop.f32.mrb[0].mxu0
        %498 = vdwg.mxu0
        %v499 = vsel %vm216, %v493, 0.0
        %v500 = vsel %vm216, %v495, 0.0
        %v501 = vadd.f32 %v499, %v500
        %502 = vadd.xlane.f32.xlu0 %v501
        %v503 = vpop.xlane.xlu0 %502
        %v504 = vrcp.pop 256.0
        %v505 = vmul.f32 %v503, %v504
        %v506 = vsub.f32 %v493, %v505
        %v507 = vsub.f32 %v495, %v505
        %v508 = vmul.f32 %v506, %v506
        %v509 = vmul.f32 %v507, %v507
        %v510 = vsel %vm216, %v508, 0.0
        %v511 = vsel %vm216, %v509, 0.0
        %v512 = vadd.f32 %v510, %v511
        %513 = vadd.xlane.f32.xlu0 %v512
        %v514 = vpop.xlane.xlu0 %513
        %v515 = vmul.f32 %v514, %v504
        %v516 = vadd.f32 %v515, 1e-05
        %v517 = vrsqrt.pop %v516
        %v518 = vmul.f32 %v506, %v517
        %v519 = vmul.f32 %v507, %v517
        %v520 = vld [vmem:[%s2] sm:$0xf]
        %522 = vset.pattern.permute.xlu0 0
        %523 = vperm.xlu0 %522, %v520
        %v524 = vpop.permute.xlu0 %523
        %v526 = vmul.f32 %v518, %v524
        %v527 = vmul.f32 %v519, %v524
        %v528 = vld [vmem:[%s3] sm:$0xf]
        %530 = vset.pattern.permute.xlu0 0
        %531 = vperm.xlu0 %530, %v528
        %v532 = vpop.permute.xlu0 %531
        %v534 = vadd.f32 %v526, %v532
        %v535 = vadd.f32 %v527, %v532
        %v538 = vcombine.low %v534, %v535
        %v540 = vadd.f32 %v238, %v538
        %541 = vst [vmem:[%s213] sm:$0xff] %v540
        %s542 = sand.u32 %s118, 1
        %s543 = scalar_lea.sflag [#allocation6], %s542
        %s544 = sand.u32 %s118, 1
        %s545 = smul.addr %s544, 8
        %s546 = scalar_lea.vmem [#allocation7], %s545
        // Predicated region
        $region41: #{tpu_custom_call.1} parent=35 // pred_check
          %p547 = pneg %p128
        $region42: #{tpu_custom_call.1} parent=35 // pred_check_branch
          %549 = sbr.rel (%p547) target = $region44
        $region43: #{tpu_custom_call.1} parent=35 // pred_region
          %s551 = ssub.s32 128, 128
          %552 = vsyncadd %s543, %s551
          %s553 = smul.addr %s21, 2
          %s554 = smul.addr %s553, 64
          %s555 = scalar_lea.hbm %s4, %s554
          %s557 = sshll.u32 %s546, 4
          %s558 = int_to_ptr.vmem [resolvable:$true] %s557
          %560 = dma.vmem_to_hbm [thread:$0]  %s558, 128, %s555, %s543
        $region44: #{tpu_custom_call.1} parent=35 // pred_fallthru
          _
      $region36: #{tpu_custom_call.1} parent=5 // pred_fallthru
        _
      %p561 = scmp.le.s32.totalorder 2, %s16
      // Predicated region
      $region45: #{tpu_custom_call.1} parent=5 // pred_check
        %p562 = pneg %p561
      $region46: #{tpu_custom_call.1} parent=5 // pred_check_branch
        %564 = sbr.rel (%p562) target = $region48
      $region47: #{tpu_custom_call.1} parent=5 // pred_region
        %s565 = ssub.s32 %s16, 2
        // Predicated region
        $region49: #{tpu_custom_call.1} parent=47 // pred_check
          %p566 = pneg %p134
        $region50: #{tpu_custom_call.1} parent=47 // pred_check_branch
          %568 = sbr.rel (%p566) target = $region52
        $region51: #{tpu_custom_call.1} parent=47 // pred_region
          %s569 = sand.u32 %s119, 1
          %s570 = scalar_lea.sflag [#allocation6], %s569
          %s571 = sand.u32 %s119, 1
          %s572 = smul.addr %s571, 8
          %s573 = scalar_lea.vmem [#allocation7], %s572
          %574 = dma.done %s570, 128
        $region52: #{tpu_custom_call.1} parent=47 // pred_fallthru
          _
      $region48: #{tpu_custom_call.1} parent=5 // pred_fallthru
        _
    $region6: #{tpu_custom_call.1} parent=1 // loop_footer
      %s20 = sadd.s32 1, %s16
    $region7: #{tpu_custom_call.1} parent=1 // loop_footer_branch
      %15 = sbr.rel target = $region3
    $region8: #{tpu_custom_call.1} parent=1 // loop_exit
      _
    %575 = vsyncpa [#allocation5], 1
    %s576 = scalar_lea.sflag [#allocation5], 1
    %577 = vsyncpa %s576, 1
    %578 = vsyncpa [#allocation6], 1
    %s579 = scalar_lea.sflag [#allocation6], 1
    %580 = vsyncpa %s579, 1

</llo_original>
